<compile_context>
chip_gen: v6e
topology: v6e:2x2x1
jax: 0.10.0
libtpu: 0.0.40
codegen_flags: <defaults>
</compile_context>

<pallas_src>
import jax
import jax.numpy as jnp
from jax.experimental import pallas as pl
from jax.experimental.pallas import tpu as pltpu

# --- constants (same values as the PyTorch module defaults) -----------------
PIXEL_MEAN = jnp.array([123.675 / 255, 116.28 / 255, 103.53 / 255],
                       dtype=jnp.float32)
PIXEL_STD = jnp.array([58.395 / 255, 57.12 / 255, 57.375 / 255],
                      dtype=jnp.float32)


# --- kernel: tiled patch-embedding projection on the MXU ---------------------
def _patch_embed_kernel(p_ref, w_ref, b_ref, o_ref):
    # int8 patches -> bf16 (exact for |x| <= 128), via a guaranteed-supported
    # i8 -> f32 -> bf16 convert chain.  f32 accumulation on the MXU, bias add in
    # f32, cast to the (bf16) output dtype only at the store.
    a = p_ref[...].astype(jnp.float32).astype(jnp.bfloat16)
    acc = jnp.dot(a, w_ref[...], preferred_element_type=jnp.float32)
    o_ref[...] = (acc + b_ref[...]).astype(o_ref.dtype)


# --- tile selection -----------------------------------------------------------
_TM_CANDIDATES = (1024, 512, 256, 128, 64, 32)   # multiples of 32 (int8 sublane tile)


def _choose_tm(M, pref):
    """Returns (tm, padded_M).  Prefers >= 2 M-steps so v7x's 2 TCs both work."""
    cands = [c for c in _TM_CANDIDATES if c <= pref]
    for c in cands:
        if M % c == 0 and M // c >= 2:
            return c, M
    for c in cands:
        if M % c == 0:
            return c, M
    if M <= 2048:                      # small problem: one full-M block is fine
        return M, M
    unit = 256                         # large irregular M: pad, slice tail later
    return unit, pl.cdiv(M, unit) * unit


def _choose_tn(D, pref):
    if D <= pref:
        return D                       # whole weight matrix stays VMEM-resident
    for c in (512, 256, 128):
        if D % c == 0:
            return c
    return D


def patch_embed_matmul(patches_i8, w_bf16, b_f32, *, out_dtype=jnp.bfloat16,
                       tm_pref=1024, tn_pref=512):
    """[M, K] int8 x [K, D] bf16 -> [M, D] out_dtype, tiled over (M, D), full-K."""
    M, K = patches_i8.shape
    K2, D = w_bf16.shape
    assert K == K2, (K, K2)

    tm, M_pad = _choose_tm(M, tm_pref)
    tn = _choose_tn(D, tn_pref)
    if M_pad != M:
        patches_i8 = jnp.pad(patches_i8, ((0, M_pad - M), (0, 0)))
    grid = (M_pad // tm, D // tn)

    out_bytes = jnp.finfo(out_dtype).bits // 8
    cost = pl.CostEstimate(
        flops=2 * M_pad * K * D,
        transcendentals=0,
        bytes_accessed=(M_pad * K * 1 + K * D * 2 + D * 4 + M_pad * D * out_bytes),
    )

    out = pl.pallas_call(
        _patch_embed_kernel,
        out_shape=jax.ShapeDtypeStruct((M_pad, D), out_dtype),
        grid_spec=pltpu.PrefetchScalarGridSpec(
            num_scalar_prefetch=0,
            grid=grid,
            in_specs=[
                pl.BlockSpec((tm, K), lambda i, j: (i, 0)),   # int8 patches tile
                pl.BlockSpec((K, tn), lambda i, j: (0, j)),   # weights (resident if tn==D)
                pl.BlockSpec((1, tn), lambda i, j: (0, j)),   # bias tile
            ],
            out_specs=pl.BlockSpec((tm, tn), lambda i, j: (i, j)),
        ),
        compiler_params=pltpu.CompilerParams(
            dimension_semantics=("parallel", "parallel")),
        cost_estimate=cost,
    )(patches_i8, w_bf16, b_f32.reshape(1, D))

    return out[:M] if M_pad != M else out


# --- preprocess folding (exact, done once on the tiny weight tensor) ---------
def _fold_preprocess_into_weights(w, b, C, patch):
    """Absorb (x/255 - mean[c]) / std[c] into the patch-embed weights/bias."""
    w = w.astype(jnp.float32)
    b = b.astype(jnp.float32)
    ch = jnp.repeat(jnp.arange(C), patch * patch)        # channel of each k
    scale_k = 1.0 / (255.0 * PIXEL_STD[ch])              # [K]
    shift_k = PIXEL_MEAN[ch] / PIXEL_STD[ch]              # [K]
    return w * scale_k[:, None], b - shift_k @ w


# --- EncoderModel.forward -----------------------------------------------------
def encoder_forward(image, w_embed, b_embed, patch, use_preprocess=True,
                    out_dtype=jnp.bfloat16):
    """image: [B, C, H, W] raw pixels in [0, 255] (uint8 preferred; any numeric ok).

    Returns lane-dense channels-last embeddings [B, H/patch, W/patch, D].
    """
    B, C, H, W = image.shape
    Hp, Wp = H // patch, W // patch
    K = C * patch * patch
    D = w_embed.shape[1]

    if use_preprocess:
        w_eff, b_eff = _fold_preprocess_into_weights(w_embed, b_embed, C, patch)
    else:
        w_eff, b_eff = w_embed.astype(jnp.float32), b_embed.astype(jnp.float32)
    # absorb the int8 zero-point (pixel = q + 128) into the bias (exact in f32)
    b_eff = b_eff + 128.0 * jnp.sum(w_eff, axis=0)

    # ONE fused XLA pass over the 8-bit image: im2col layout + (-128) shift +
    # int8 cast.  No f32/bf16 patch matrix ever touches HBM.
    q = (image.astype(jnp.int32) - 128).astype(jnp.int8)   # exact for pixels 0..255
    patches = q.reshape(B, C, Hp, patch, Wp, patch)
    patches = patches.transpose(0, 2, 4, 1, 3, 5).reshape(B * Hp * Wp, K)

    out = patch_embed_matmul(patches,
                             w_eff.astype(jnp.bfloat16),
                             b_eff.astype(jnp.float32),
                             out_dtype=out_dtype)
    # free reshape; D stays the lane-dense last dimension
    return out.reshape(B, Hp, Wp, D)


# --- pure-JAX reference for correctness check ---------------------------------
def _reference(image, w_embed, b_embed, patch, use_preprocess=True):
    x = image.astype(jnp.float32)
    if use_preprocess:
        x = x / 255.0
        x = (x - PIXEL_MEAN[None, :, None, None]) / PIXEL_STD[None, :, None, None]
    B, C, H, W = x.shape
    Hp, Wp = H // patch, W // patch
    p = x.reshape(B, C, Hp, patch, Wp, patch).transpose(0, 2, 4, 1, 3, 5)
    p = p.reshape(B * Hp * Wp, C * patch * patch)
    o = p @ w_embed.astype(jnp.float32) + b_embed.astype(jnp.float32)[None, :]
    return o.reshape(B, Hp, Wp, -1)


if __name__ == "__main__":
    B, C, H, W = 2, 3, 32, 32
    PATCH = 16
    EMBED_DIM = 256

    key = jax.random.PRNGKey(0)
    k_img, k_w, k_b = jax.random.split(key, 3)

    # raw uint8 pixel values in [0, 255] (what the module's preprocess expects)
    image = jax.random.randint(k_img, (B, C, H, W), 0, 256,
                               dtype=jnp.int32).astype(jnp.uint8)

    # deterministic synthetic encoder weights (patch-embedding stand-in)
    w_embed = (jax.random.normal(k_w, (C * PATCH * PATCH, EMBED_DIM),
                                 dtype=jnp.float32) * 0.02)
    b_embed = jax.random.normal(k_b, (EMBED_DIM,), dtype=jnp.float32) * 0.02

    # jit so the wrapper-side im2col/shift/cast fuse into a single int8 HBM pass
    fwd = jax.jit(lambda im, w, b: encoder_forward(im, w, b, PATCH,
                                                   use_preprocess=True))
    out = jax.block_until_ready(fwd(image, w_embed, b_embed))

    assert out.shape == (B, H // PATCH, W // PATCH, EMBED_DIM), out.shape
    assert out.dtype == jnp.bfloat16, out.dtype

    ref = _reference(image, w_embed, b_embed, PATCH, use_preprocess=True)
    out_f32 = out.astype(jnp.float32)
    # bf16 MXU operands (folded weights) + bf16 output store -> ~1e-2 abs error
    assert jnp.allclose(out_f32, ref, atol=5e-2, rtol=5e-2), \
        f"mismatch vs reference, max abs err {jnp.max(jnp.abs(out_f32 - ref))}"

    print("KERNEL_OK")
</pallas_src>

<mosaic_0001>
module attributes {stable_mosaic.version = 11 : i64} {
  func.func @_patch_embed_kernel(%arg0: i32, %arg1: i32, %arg2: memref<8x768xi8, #tpu.memory_space<vmem>>, %arg3: memref<768x256xbf16, #tpu.memory_space<vmem>>, %arg4: memref<1x256xf32, #tpu.memory_space<vmem>>, %arg5: memref<8x256xbf16, #tpu.memory_space<vmem>>) attributes {dimension_semantics = [#tpu.dimension_semantics<parallel>, #tpu.dimension_semantics<parallel>], iteration_bounds = array<i64: 1, 1>, scalar_prefetch = 0 : i64, scratch_operands = 0 : i64, tpu.core_type = #tpu.core_type<tc>, window_params = [{transform_indices = @transform_0, window_bounds = array<i64: 8, 768>}, {transform_indices = @transform_1, window_bounds = array<i64: 768, 256>}, {transform_indices = @transform_2, window_bounds = array<i64: 1, 256>}, {transform_indices = @transform_3, window_bounds = array<i64: 8, 256>}]} {
    %c0 = arith.constant 0 : index
    %c0_0 = arith.constant 0 : index
    %0 = vector.load %arg2[%c0, %c0_0] : memref<8x768xi8, #tpu.memory_space<vmem>>, vector<8x768xi8>
    %1 = arith.sitofp %0 : vector<8x768xi8> to vector<8x768xf32>
    %2 = arith.truncf %1 : vector<8x768xf32> to vector<8x768xbf16>
    %c0_1 = arith.constant 0 : index
    %c0_2 = arith.constant 0 : index
    %3 = vector.load %arg3[%c0_1, %c0_2] : memref<768x256xbf16, #tpu.memory_space<vmem>>, vector<768x256xbf16>
    %cst = arith.constant dense<0.000000e+00> : vector<8x256xf32>
    %4 = tpu.matmul %2, %3, %cst {dimension_numbers = #tpu.dot_dimension_numbers<[1], [0], [0], [1], [0, 0, 1, 1], [], []>} : vector<8x768xbf16>, vector<768x256xbf16>, vector<8x256xf32> -> vector<8x256xf32>
    %c0_3 = arith.constant 0 : index
    %c0_4 = arith.constant 0 : index
    %5 = vector.load %arg4[%c0_3, %c0_4] : memref<1x256xf32, #tpu.memory_space<vmem>>, vector<1x256xf32>
    %6 = vector.broadcast %5 : vector<1x256xf32> to vector<8x256xf32>
    %7 = arith.addf %4, %6 : vector<8x256xf32>
    %8 = arith.truncf %7 : vector<8x256xf32> to vector<8x256xbf16>
    %c0_5 = arith.constant 0 : index
    %c0_6 = arith.constant 0 : index
    %9 = vector.load %arg5[%c0_5, %c0_6] : memref<8x256xbf16, #tpu.memory_space<vmem>>, vector<8x256xbf16>
    tpu.vector_store %arg5[%c0_5, %c0_6], %8 {strides = array<i32>} : memref<8x256xbf16, #tpu.memory_space<vmem>>, vector<8x256xbf16>,
    return
  }
  func.func @transform_0(%arg0: i32, %arg1: i32) -> (i32, i32) {
    %c0_i32 = arith.constant 0 : i32
    %c0_i32_0 = arith.constant 0 : i32
    return %arg0, %c0_i32 : i32, i32
  }
  func.func @transform_1(%arg0: i32, %arg1: i32) -> (i32, i32) {
    %c0_i32 = arith.constant 0 : i32
    %c0_i32_0 = arith.constant 0 : i32
    return %c0_i32, %arg1 : i32, i32
  }
  func.func @transform_2(%arg0: i32, %arg1: i32) -> (i32, i32) {
    %c0_i32 = arith.constant 0 : i32
    %c0_i32_0 = arith.constant 0 : i32
    return %c0_i32, %arg1 : i32, i32
  }
  func.func @transform_3(%arg0: i32, %arg1: i32) -> (i32, i32) {
    %c0_i32 = arith.constant 0 : i32
    return %arg0, %arg1 : i32, i32
  }
}

</mosaic_0001>

<llo_original>
// kernel: _lambda_.1
$region0: #{_lambda_.1}
  #allocation0 [shape = 'u32[]', space=smem, size = 0x4, offset = 0x4, fixed_abs, tag = 'smem constant byte address 0x4 - core index']
  #allocation1 [shape = 'u32[144,128]{1,0:T(1,128)}', space=vmem, size = 0x12000, scoped, tag = 'internal scratch']
  %s0 = inlined_call_operand.vmem [shape: s8[8,768], index: 0, kind: input, shape index: {}]
  %s1 = inlined_call_operand.vmem [shape: bf16[768,256], index: 1, kind: input, shape index: {}]
  %s2 = inlined_call_operand.vmem [shape: f32[1,256], index: 2, kind: input, shape index: {}]
  %s3 = inlined_call_operand.vmem [shape: bf16[8,256], index: 3, kind: output, shape index: {}]
  %s4 = sld [smem:[#allocation0]]
  $region22: #{_lambda_.1} parent=0
    _
  %s6 = ssub.s32 1, %s4
  %s7 = scalar_select 0, %s6, %s4
  // Predicated region
  $region2: #{_lambda_.1} parent=0 // pred_check
    _
  $region3: #{_lambda_.1} parent=0 // pred_check_branch
    %9 = sbr.rel (0) target = $region5
  $region4: #{_lambda_.1} parent=0 // pred_region
    _
  $region5: #{_lambda_.1} parent=0 // pred_fallthru
    _
  // Predicated region
  $region6: #{_lambda_.1} parent=0 // pred_check
    _
  $region7: #{_lambda_.1} parent=0 // pred_check_branch
    %11 = sbr.rel (0) target = $region9
  $region8: #{_lambda_.1} parent=0 // pred_region
    _
  $region9: #{_lambda_.1} parent=0 // pred_fallthru
    _
  // Predicated region
  $region10: #{_lambda_.1} parent=0 // pred_check
    _
  $region11: #{_lambda_.1} parent=0 // pred_check_branch
    %13 = sbr.rel (0) target = $region13
  $region12: #{_lambda_.1} parent=0 // pred_region
    _
  $region13: #{_lambda_.1} parent=0 // pred_fallthru
    _
  %v14 = vld [vmem:[%s0] sm:$0xff]
  %v15 = vld [vmem:[%s0 + $0x8] sm:$0xf]
  %v16 = vunpack.c.l.s8.bf16 %v14
  %v17 = vunpack.c.h.s8.bf16 %v14
  %v18 = vunpack.c.l.s8.bf16 %v15
  %v19 = vld [vmem:[%s1] sm:$0xff]
  %v20 = vld [vmem:[%s1 + $0x8] sm:$0xff]
  %v21 = vld [vmem:[%s1 + $0x10] sm:$0xff]
  %v22 = vld [vmem:[%s1 + $0x18] sm:$0xff]
  %v23 = vld [vmem:[%s1 + $0x20] sm:$0xff]
  %v24 = vld [vmem:[%s1 + $0x28] sm:$0xff]
  %v25 = vld [vmem:[%s1 + $0x30] sm:$0xff]
  %v26 = vld [vmem:[%s1 + $0x38] sm:$0xff]
  %v27 = vld [vmem:[%s1 + $0x40] sm:$0xff]
  %v28 = vld [vmem:[%s1 + $0x48] sm:$0xff]
  %v29 = vld [vmem:[%s1 + $0x50] sm:$0xff]
  %v30 = vld [vmem:[%s1 + $0x58] sm:$0xff]
  %v31 = vld [vmem:[%s1 + $0x60] sm:$0xff]
  %v32 = vld [vmem:[%s1 + $0x68] sm:$0xff]
  %v33 = vld [vmem:[%s1 + $0x70] sm:$0xff]
  %v34 = vld [vmem:[%s1 + $0x78] sm:$0xff]
  %v35 = vld [vmem:[%s1 + $0x80] sm:$0xff]
  %v36 = vld [vmem:[%s1 + $0x88] sm:$0xff]
  %v37 = vld [vmem:[%s1 + $0x90] sm:$0xff]
  %v38 = vld [vmem:[%s1 + $0x98] sm:$0xff]
  %v39 = vld [vmem:[%s1 + $0xa0] sm:$0xff]
  %v40 = vld [vmem:[%s1 + $0xa8] sm:$0xff]
  %v41 = vld [vmem:[%s1 + $0xb0] sm:$0xff]
  %v42 = vld [vmem:[%s1 + $0xb8] sm:$0xff]
  %v43 = vld [vmem:[%s1 + $0xc0] sm:$0xff]
  %v44 = vld [vmem:[%s1 + $0xc8] sm:$0xff]
  %v45 = vld [vmem:[%s1 + $0xd0] sm:$0xff]
  %v46 = vld [vmem:[%s1 + $0xd8] sm:$0xff]
  %v47 = vld [vmem:[%s1 + $0xe0] sm:$0xff]
  %v48 = vld [vmem:[%s1 + $0xe8] sm:$0xff]
  %v49 = vld [vmem:[%s1 + $0xf0] sm:$0xff]
  %v50 = vld [vmem:[%s1 + $0xf8] sm:$0xff]
  %v51 = vld [vmem:[%s1 + $0x100] sm:$0xff]
  %v52 = vld [vmem:[%s1 + $0x108] sm:$0xff]
  %v53 = vld [vmem:[%s1 + $0x110] sm:$0xff]
  %v54 = vld [vmem:[%s1 + $0x118] sm:$0xff]
  %v55 = vld [vmem:[%s1 + $0x120] sm:$0xff]
  %v56 = vld [vmem:[%s1 + $0x128] sm:$0xff]
  %v57 = vld [vmem:[%s1 + $0x130] sm:$0xff]
  %v58 = vld [vmem:[%s1 + $0x138] sm:$0xff]
  %v59 = vld [vmem:[%s1 + $0x140] sm:$0xff]
  %v60 = vld [vmem:[%s1 + $0x148] sm:$0xff]
  %v61 = vld [vmem:[%s1 + $0x150] sm:$0xff]
  %v62 = vld [vmem:[%s1 + $0x158] sm:$0xff]
  %v63 = vld [vmem:[%s1 + $0x160] sm:$0xff]
  %v64 = vld [vmem:[%s1 + $0x168] sm:$0xff]
  %v65 = vld [vmem:[%s1 + $0x170] sm:$0xff]
  %v66 = vld [vmem:[%s1 + $0x178] sm:$0xff]
  %v67 = vld [vmem:[%s1 + $0x180] sm:$0xff]
  %v68 = vld [vmem:[%s1 + $0x188] sm:$0xff]
  %v69 = vld [vmem:[%s1 + $0x190] sm:$0xff]
  %v70 = vld [vmem:[%s1 + $0x198] sm:$0xff]
  %v71 = vld [vmem:[%s1 + $0x1a0] sm:$0xff]
  %v72 = vld [vmem:[%s1 + $0x1a8] sm:$0xff]
  %v73 = vld [vmem:[%s1 + $0x1b0] sm:$0xff]
  %v74 = vld [vmem:[%s1 + $0x1b8] sm:$0xff]
  %v75 = vld [vmem:[%s1 + $0x1c0] sm:$0xff]
  %v76 = vld [vmem:[%s1 + $0x1c8] sm:$0xff]
  %v77 = vld [vmem:[%s1 + $0x1d0] sm:$0xff]
  %v78 = vld [vmem:[%s1 + $0x1d8] sm:$0xff]
  %v79 = vld [vmem:[%s1 + $0x1e0] sm:$0xff]
  %v80 = vld [vmem:[%s1 + $0x1e8] sm:$0xff]
  %v81 = vld [vmem:[%s1 + $0x1f0] sm:$0xff]
  %v82 = vld [vmem:[%s1 + $0x1f8] sm:$0xff]
  %v83 = vld [vmem:[%s1 + $0x200] sm:$0xff]
  %v84 = vld [vmem:[%s1 + $0x208] sm:$0xff]
  %v85 = vld [vmem:[%s1 + $0x210] sm:$0xff]
  %v86 = vld [vmem:[%s1 + $0x218] sm:$0xff]
  %v87 = vld [vmem:[%s1 + $0x220] sm:$0xff]
  %v88 = vld [vmem:[%s1 + $0x228] sm:$0xff]
  %v89 = vld [vmem:[%s1 + $0x230] sm:$0xff]
  %v90 = vld [vmem:[%s1 + $0x238] sm:$0xff]
  %v91 = vld [vmem:[%s1 + $0x240] sm:$0xff]
  %v92 = vld [vmem:[%s1 + $0x248] sm:$0xff]
  %v93 = vld [vmem:[%s1 + $0x250] sm:$0xff]
  %v94 = vld [vmem:[%s1 + $0x258] sm:$0xff]
  %v95 = vld [vmem:[%s1 + $0x260] sm:$0xff]
  %v96 = vld [vmem:[%s1 + $0x268] sm:$0xff]
  %v97 = vld [vmem:[%s1 + $0x270] sm:$0xff]
  %v98 = vld [vmem:[%s1 + $0x278] sm:$0xff]
  %v99 = vld [vmem:[%s1 + $0x280] sm:$0xff]
  %v100 = vld [vmem:[%s1 + $0x288] sm:$0xff]
  %v101 = vld [vmem:[%s1 + $0x290] sm:$0xff]
  %v102 = vld [vmem:[%s1 + $0x298] sm:$0xff]
  %v103 = vld [vmem:[%s1 + $0x2a0] sm:$0xff]
  %v104 = vld [vmem:[%s1 + $0x2a8] sm:$0xff]
  %v105 = vld [vmem:[%s1 + $0x2b0] sm:$0xff]
  %v106 = vld [vmem:[%s1 + $0x2b8] sm:$0xff]
  %v107 = vld [vmem:[%s1 + $0x2c0] sm:$0xff]
  %v108 = vld [vmem:[%s1 + $0x2c8] sm:$0xff]
  %v109 = vld [vmem:[%s1 + $0x2d0] sm:$0xff]
  %v110 = vld [vmem:[%s1 + $0x2d8] sm:$0xff]
  %v111 = vld [vmem:[%s1 + $0x2e0] sm:$0xff]
  %v112 = vld [vmem:[%s1 + $0x2e8] sm:$0xff]
  %v113 = vld [vmem:[%s1 + $0x2f0] sm:$0xff]
  %v114 = vld [vmem:[%s1 + $0x2f8] sm:$0xff]
  %v115 = vld [vmem:[%s2] sm:$0x3]
  %v117 = vlaneseq
  %v118 = vshrl.u32 %v117, 7
  %v119 = vsub.s32 0, %v118
  %v120 = vrot.slane %v115, %v119
  %v121 = vlaneseq
  %v122 = vshrl.u32 %v121, 7
  %v123 = vsub.s32 1, %v122
  %v124 = vrot.slane %v115, %v123
  %v130 = vunpack.c.l.b16 %v16
  %v131 = vunpack.c.h.b16 %v16
  %v132 = vunpack.c.l.b16 %v17
  %v133 = vunpack.c.h.b16 %v17
  %v134 = vunpack.c.l.b16 %v18
  %v135 = vunpack.c.h.b16 %v18
  %v136 = vpack.c.b16 %v130, %v130
  %v137 = vpack.c.b16 %v131, %v131
  %v138 = vpack.c.b16 %v132, %v132
  %v139 = vpack.c.b16 %v133, %v133
  %v140 = vpack.c.b16 %v134, %v134
  %v141 = vpack.c.b16 %v135, %v135
  %v244 = vunpack.c.l.b16 %v19
  %v245 = vunpack.c.h.b16 %v19
  %v246 = vunpack.c.l.b16 %v20
  %v247 = vunpack.c.h.b16 %v20
  %v248 = vunpack.c.l.b16 %v21
  %v249 = vunpack.c.h.b16 %v21
  %v250 = vunpack.c.l.b16 %v22
  %v251 = vunpack.c.h.b16 %v22
  %v252 = vunpack.c.l.b16 %v23
  %v253 = vunpack.c.h.b16 %v23
  %v254 = vunpack.c.l.b16 %v24
  %v255 = vunpack.c.h.b16 %v24
  %v256 = vunpack.c.l.b16 %v25
  %v257 = vunpack.c.h.b16 %v25
  %v258 = vunpack.c.l.b16 %v26
  %v259 = vunpack.c.h.b16 %v26
  %v260 = vunpack.c.l.b16 %v27
  %v261 = vunpack.c.h.b16 %v27
  %v262 = vunpack.c.l.b16 %v28
  %v263 = vunpack.c.h.b16 %v28
  %v264 = vunpack.c.l.b16 %v29
  %v265 = vunpack.c.h.b16 %v29
  %v266 = vunpack.c.l.b16 %v30
  %v267 = vunpack.c.h.b16 %v30
  %v268 = vunpack.c.l.b16 %v31
  %v269 = vunpack.c.h.b16 %v31
  %v270 = vunpack.c.l.b16 %v32
  %v271 = vunpack.c.h.b16 %v32
  %v272 = vunpack.c.l.b16 %v33
  %v273 = vunpack.c.h.b16 %v33
  %v274 = vunpack.c.l.b16 %v34
  %v275 = vunpack.c.h.b16 %v34
  %v276 = vunpack.c.l.b16 %v35
  %v277 = vunpack.c.h.b16 %v35
  %v278 = vunpack.c.l.b16 %v36
  %v279 = vunpack.c.h.b16 %v36
  %v280 = vunpack.c.l.b16 %v37
  %v281 = vunpack.c.h.b16 %v37
  %v282 = vunpack.c.l.b16 %v38
  %v283 = vunpack.c.h.b16 %v38
  %v284 = vunpack.c.l.b16 %v39
  %v285 = vunpack.c.h.b16 %v39
  %v286 = vunpack.c.l.b16 %v40
  %v287 = vunpack.c.h.b16 %v40
  %v288 = vunpack.c.l.b16 %v41
  %v289 = vunpack.c.h.b16 %v41
  %v290 = vunpack.c.l.b16 %v42
  %v291 = vunpack.c.h.b16 %v42
  %v292 = vunpack.c.l.b16 %v43
  %v293 = vunpack.c.h.b16 %v43
  %v294 = vunpack.c.l.b16 %v44
  %v295 = vunpack.c.h.b16 %v44
  %v296 = vunpack.c.l.b16 %v45
  %v297 = vunpack.c.h.b16 %v45
  %v298 = vunpack.c.l.b16 %v46
  %v299 = vunpack.c.h.b16 %v46
  %v300 = vunpack.c.l.b16 %v47
  %v301 = vunpack.c.h.b16 %v47
  %v302 = vunpack.c.l.b16 %v48
  %v303 = vunpack.c.h.b16 %v48
  %v304 = vunpack.c.l.b16 %v49
  %v305 = vunpack.c.h.b16 %v49
  %v306 = vunpack.c.l.b16 %v50
  %v307 = vunpack.c.h.b16 %v50
  %v308 = vunpack.c.l.b16 %v51
  %v309 = vunpack.c.h.b16 %v51
  %v310 = vunpack.c.l.b16 %v52
  %v311 = vunpack.c.h.b16 %v52
  %v312 = vunpack.c.l.b16 %v53
  %v313 = vunpack.c.h.b16 %v53
  %v314 = vunpack.c.l.b16 %v54
  %v315 = vunpack.c.h.b16 %v54
  %v316 = vunpack.c.l.b16 %v55
  %v317 = vunpack.c.h.b16 %v55
  %v318 = vunpack.c.l.b16 %v56
  %v319 = vunpack.c.h.b16 %v56
  %v320 = vunpack.c.l.b16 %v57
  %v321 = vunpack.c.h.b16 %v57
  %v322 = vunpack.c.l.b16 %v58
  %v323 = vunpack.c.h.b16 %v58
  %v324 = vunpack.c.l.b16 %v59
  %v325 = vunpack.c.h.b16 %v59
  %v326 = vunpack.c.l.b16 %v60
  %v327 = vunpack.c.h.b16 %v60
  %v328 = vunpack.c.l.b16 %v61
  %v329 = vunpack.c.h.b16 %v61
  %v330 = vunpack.c.l.b16 %v62
  %v331 = vunpack.c.h.b16 %v62
  %v332 = vunpack.c.l.b16 %v63
  %v333 = vunpack.c.h.b16 %v63
  %v334 = vunpack.c.l.b16 %v64
  %v335 = vunpack.c.h.b16 %v64
  %v336 = vunpack.c.l.b16 %v65
  %v337 = vunpack.c.h.b16 %v65
  %v338 = vunpack.c.l.b16 %v66
  %v339 = vunpack.c.h.b16 %v66
  %v340 = vunpack.c.l.b16 %v67
  %v341 = vunpack.c.h.b16 %v67
  %v342 = vunpack.c.l.b16 %v68
  %v343 = vunpack.c.h.b16 %v68
  %v344 = vunpack.c.l.b16 %v69
  %v345 = vunpack.c.h.b16 %v69
  %v346 = vunpack.c.l.b16 %v70
  %v347 = vunpack.c.h.b16 %v70
  %v348 = vunpack.c.l.b16 %v71
  %v349 = vunpack.c.h.b16 %v71
  %v350 = vunpack.c.l.b16 %v72
  %v351 = vunpack.c.h.b16 %v72
  %v352 = vunpack.c.l.b16 %v73
  %v353 = vunpack.c.h.b16 %v73
  %v354 = vunpack.c.l.b16 %v74
  %v355 = vunpack.c.h.b16 %v74
  %v356 = vunpack.c.l.b16 %v75
  %v357 = vunpack.c.h.b16 %v75
  %v358 = vunpack.c.l.b16 %v76
  %v359 = vunpack.c.h.b16 %v76
  %v360 = vunpack.c.l.b16 %v77
  %v361 = vunpack.c.h.b16 %v77
  %v362 = vunpack.c.l.b16 %v78
  %v363 = vunpack.c.h.b16 %v78
  %v364 = vunpack.c.l.b16 %v79
  %v365 = vunpack.c.h.b16 %v79
  %v366 = vunpack.c.l.b16 %v80
  %v367 = vunpack.c.h.b16 %v80
  %v368 = vunpack.c.l.b16 %v81
  %v369 = vunpack.c.h.b16 %v81
  %v370 = vunpack.c.l.b16 %v82
  %v371 = vunpack.c.h.b16 %v82
  %v372 = vunpack.c.l.b16 %v83
  %v373 = vunpack.c.h.b16 %v83
  %v374 = vunpack.c.l.b16 %v84
  %v375 = vunpack.c.h.b16 %v84
  %v376 = vunpack.c.l.b16 %v85
  %v377 = vunpack.c.h.b16 %v85
  %v378 = vunpack.c.l.b16 %v86
  %v379 = vunpack.c.h.b16 %v86
  %v380 = vunpack.c.l.b16 %v87
  %v381 = vunpack.c.h.b16 %v87
  %v382 = vunpack.c.l.b16 %v88
  %v383 = vunpack.c.h.b16 %v88
  %v384 = vunpack.c.l.b16 %v89
  %v385 = vunpack.c.h.b16 %v89
  %v386 = vunpack.c.l.b16 %v90
  %v387 = vunpack.c.h.b16 %v90
  %v388 = vunpack.c.l.b16 %v91
  %v389 = vunpack.c.h.b16 %v91
  %v390 = vunpack.c.l.b16 %v92
  %v391 = vunpack.c.h.b16 %v92
  %v392 = vunpack.c.l.b16 %v93
  %v393 = vunpack.c.h.b16 %v93
  %v394 = vunpack.c.l.b16 %v94
  %v395 = vunpack.c.h.b16 %v94
  %v396 = vunpack.c.l.b16 %v95
  %v397 = vunpack.c.h.b16 %v95
  %v398 = vunpack.c.l.b16 %v96
  %v399 = vunpack.c.h.b16 %v96
  %v400 = vunpack.c.l.b16 %v97
  %v401 = vunpack.c.h.b16 %v97
  %v402 = vunpack.c.l.b16 %v98
  %v403 = vunpack.c.h.b16 %v98
  %v404 = vunpack.c.l.b16 %v99
  %v405 = vunpack.c.h.b16 %v99
  %v406 = vunpack.c.l.b16 %v100
  %v407 = vunpack.c.h.b16 %v100
  %v408 = vunpack.c.l.b16 %v101
  %v409 = vunpack.c.h.b16 %v101
  %v410 = vunpack.c.l.b16 %v102
  %v411 = vunpack.c.h.b16 %v102
  %v412 = vunpack.c.l.b16 %v103
  %v413 = vunpack.c.h.b16 %v103
  %v414 = vunpack.c.l.b16 %v104
  %v415 = vunpack.c.h.b16 %v104
  %v416 = vunpack.c.l.b16 %v105
  %v417 = vunpack.c.h.b16 %v105
  %v418 = vunpack.c.l.b16 %v106
  %v419 = vunpack.c.h.b16 %v106
  %v420 = vunpack.c.l.b16 %v107
  %v421 = vunpack.c.h.b16 %v107
  %v422 = vunpack.c.l.b16 %v108
  %v423 = vunpack.c.h.b16 %v108
  %v424 = vunpack.c.l.b16 %v109
  %v425 = vunpack.c.h.b16 %v109
  %v426 = vunpack.c.l.b16 %v110
  %v427 = vunpack.c.h.b16 %v110
  %v428 = vunpack.c.l.b16 %v111
  %v429 = vunpack.c.h.b16 %v111
  %v430 = vunpack.c.l.b16 %v112
  %v431 = vunpack.c.h.b16 %v112
  %v432 = vunpack.c.l.b16 %v113
  %v433 = vunpack.c.h.b16 %v113
  %v434 = vunpack.c.l.b16 %v114
  %v435 = vunpack.c.h.b16 %v114
  %v436 = vpack.c.b16 %v246, %v244
  %v437 = vpack.c.b16 %v247, %v245
  %v438 = vpack.c.b16 %v250, %v248
  %v439 = vpack.c.b16 %v251, %v249
  %v440 = vpack.c.b16 %v254, %v252
  %v441 = vpack.c.b16 %v255, %v253
  %v442 = vpack.c.b16 %v258, %v256
  %v443 = vpack.c.b16 %v259, %v257
  %v444 = vpack.c.b16 %v262, %v260
  %v445 = vpack.c.b16 %v263, %v261
  %v446 = vpack.c.b16 %v266, %v264
  %v447 = vpack.c.b16 %v267, %v265
  %v448 = vpack.c.b16 %v270, %v268
  %v449 = vpack.c.b16 %v271, %v269
  %v450 = vpack.c.b16 %v274, %v272
  %v451 = vpack.c.b16 %v275, %v273
  %v452 = vpack.c.b16 %v278, %v276
  %v453 = vpack.c.b16 %v279, %v277
  %v454 = vpack.c.b16 %v282, %v280
  %v455 = vpack.c.b16 %v283, %v281
  %v456 = vpack.c.b16 %v286, %v284
  %v457 = vpack.c.b16 %v287, %v285
  %v458 = vpack.c.b16 %v290, %v288
  %v459 = vpack.c.b16 %v291, %v289
  %v460 = vpack.c.b16 %v294, %v292
  %v461 = vpack.c.b16 %v295, %v293
  %v462 = vpack.c.b16 %v298, %v296
  %v463 = vpack.c.b16 %v299, %v297
  %v464 = vpack.c.b16 %v302, %v300
  %v465 = vpack.c.b16 %v303, %v301
  %v466 = vpack.c.b16 %v306, %v304
  %v467 = vpack.c.b16 %v307, %v305
  %v468 = vpack.c.b16 %v310, %v308
  %v469 = vpack.c.b16 %v311, %v309
  %v470 = vpack.c.b16 %v314, %v312
  %v471 = vpack.c.b16 %v315, %v313
  %v472 = vpack.c.b16 %v318, %v316
  %v473 = vpack.c.b16 %v319, %v317
  %v474 = vpack.c.b16 %v322, %v320
  %v475 = vpack.c.b16 %v323, %v321
  %v476 = vpack.c.b16 %v326, %v324
  %v477 = vpack.c.b16 %v327, %v325
  %v478 = vpack.c.b16 %v330, %v328
  %v479 = vpack.c.b16 %v331, %v329
  %v480 = vpack.c.b16 %v334, %v332
  %v481 = vpack.c.b16 %v335, %v333
  %v482 = vpack.c.b16 %v338, %v336
  %v483 = vpack.c.b16 %v339, %v337
  %v484 = vpack.c.b16 %v342, %v340
  %v485 = vpack.c.b16 %v343, %v341
  %v486 = vpack.c.b16 %v346, %v344
  %v487 = vpack.c.b16 %v347, %v345
  %v488 = vpack.c.b16 %v350, %v348
  %v489 = vpack.c.b16 %v351, %v349
  %v490 = vpack.c.b16 %v354, %v352
  %v491 = vpack.c.b16 %v355, %v353
  %v492 = vpack.c.b16 %v358, %v356
  %v493 = vpack.c.b16 %v359, %v357
  %v494 = vpack.c.b16 %v362, %v360
  %v495 = vpack.c.b16 %v363, %v361
  %v496 = vpack.c.b16 %v366, %v364
  %v497 = vpack.c.b16 %v367, %v365
  %v498 = vpack.c.b16 %v370, %v368
  %v499 = vpack.c.b16 %v371, %v369
  %v500 = vpack.c.b16 %v374, %v372
  %v501 = vpack.c.b16 %v375, %v373
  %v502 = vpack.c.b16 %v378, %v376
  %v503 = vpack.c.b16 %v379, %v377
  %v504 = vpack.c.b16 %v382, %v380
  %v505 = vpack.c.b16 %v383, %v381
  %v506 = vpack.c.b16 %v386, %v384
  %v507 = vpack.c.b16 %v387, %v385
  %v508 = vpack.c.b16 %v390, %v388
  %v509 = vpack.c.b16 %v391, %v389
  %v510 = vpack.c.b16 %v394, %v392
  %v511 = vpack.c.b16 %v395, %v393
  %v512 = vpack.c.b16 %v398, %v396
  %v513 = vpack.c.b16 %v399, %v397
  %v514 = vpack.c.b16 %v402, %v400
  %v515 = vpack.c.b16 %v403, %v401
  %v516 = vpack.c.b16 %v406, %v404
  %v517 = vpack.c.b16 %v407, %v405
  %v518 = vpack.c.b16 %v410, %v408
  %v519 = vpack.c.b16 %v411, %v409
  %v520 = vpack.c.b16 %v414, %v412
  %v521 = vpack.c.b16 %v415, %v413
  %v522 = vpack.c.b16 %v418, %v416
  %v523 = vpack.c.b16 %v419, %v417
  %v524 = vpack.c.b16 %v422, %v420
  %v525 = vpack.c.b16 %v423, %v421
  %v526 = vpack.c.b16 %v426, %v424
  %v527 = vpack.c.b16 %v427, %v425
  %v528 = vpack.c.b16 %v430, %v428
  %v529 = vpack.c.b16 %v431, %v429
  %v530 = vpack.c.b16 %v434, %v432
  %v531 = vpack.c.b16 %v435, %v433
  %628 = vmatprep.subr.bf16.mxu0 %v451
  %629 = vmatpush1.bf16.msra.mxu0 %v450
  %630 = vmatprep.subr.bf16.mxu0 %v449
  %631 = vmatpush1.bf16.msra.mxu0 %v448
  %632 = vmatprep.subr.bf16.mxu0 %v447
  %633 = vmatpush1.bf16.msra.mxu0 %v446
  %634 = vmatprep.subr.bf16.mxu0 %v445
  %635 = vmatpush1.bf16.msra.mxu0 %v444
  %636 = vmatprep.subr.bf16.mxu0 %v443
  %637 = vmatpush1.bf16.msra.mxu0 %v442
  %638 = vmatprep.subr.bf16.mxu0 %v441
  %639 = vmatpush1.bf16.msra.mxu0 %v440
  %640 = vmatprep.subr.bf16.mxu0 %v439
  %641 = vmatpush1.bf16.msra.mxu0 %v438
  %642 = vmatprep.subr.bf16.mxu0 %v437
  %643 = vmatpush1.bf16.msra.mxu0 %v436
  %644 = vmatprep.subr.bf16.mxu0 %v467
  %645 = vmatpush2.bf16.msra.mxu0 %v466
  %646 = vmatprep.subr.bf16.mxu0 %v465
  %647 = vmatpush2.bf16.msra.mxu0 %v464
  %648 = vmatprep.subr.bf16.mxu0 %v463
  %649 = vmatpush2.bf16.msra.mxu0 %v462
  %650 = vmatprep.subr.bf16.mxu0 %v461
  %651 = vmatpush2.bf16.msra.mxu0 %v460
  %652 = vmatprep.subr.bf16.mxu0 %v459
  %653 = vmatpush2.bf16.msra.mxu0 %v458
  %654 = vmatprep.subr.bf16.mxu0 %v457
  %655 = vmatpush2.bf16.msra.mxu0 %v456
  %656 = vmatprep.subr.bf16.mxu0 %v455
  %657 = vmatpush2.bf16.msra.mxu0 %v454
  %658 = vmatprep.subr.bf16.mxu0 %v453
  %659 = vmatpush2.bf16.msra.mxu0 %v452
  %660 = vmatprep.mubr.bf16.mxu0 %v137
  %661 = vmatmul.mubr.bf16.gmra.mxu0 %v136
  %v662 = vpop.f32.mrf.mxu0
  %v663 = vadd.f32 %v120, %v662
  %v664 = vpop.f32.mrf.mxu0
  %v665 = vadd.f32 %v124, %v664
  %v666 = vpop.f32.mrf.mxu0
  %v667 = vpop.f32.mrf.mxu0
  %668 = vdwg.mxu0
  %669 = vmatprep.subr.bf16.mxu0 %v483
  %670 = vmatpush1.bf16.msra.mxu0 %v482
  %671 = vmatprep.subr.bf16.mxu0 %v481
  %672 = vmatpush1.bf16.msra.mxu0 %v480
  %673 = vmatprep.subr.bf16.mxu0 %v479
  %674 = vmatpush1.bf16.msra.mxu0 %v478
  %675 = vmatprep.subr.bf16.mxu0 %v477
  %676 = vmatpush1.bf16.msra.mxu0 %v476
  %677 = vmatprep.subr.bf16.mxu0 %v475
  %678 = vmatpush1.bf16.msra.mxu0 %v474
  %679 = vmatprep.subr.bf16.mxu0 %v473
  %680 = vmatpush1.bf16.msra.mxu0 %v472
  %681 = vmatprep.subr.bf16.mxu0 %v471
  %682 = vmatpush1.bf16.msra.mxu0 %v470
  %683 = vmatprep.subr.bf16.mxu0 %v469
  %684 = vmatpush1.bf16.msra.mxu0 %v468
  %685 = vmatprep.subr.bf16.mxu0 %v499
  %686 = vmatpush2.bf16.msra.mxu0 %v498
  %687 = vmatprep.subr.bf16.mxu0 %v497
  %688 = vmatpush2.bf16.msra.mxu0 %v496
  %689 = vmatprep.subr.bf16.mxu0 %v495
  %690 = vmatpush2.bf16.msra.mxu0 %v494
  %691 = vmatprep.subr.bf16.mxu0 %v493
  %692 = vmatpush2.bf16.msra.mxu0 %v492
  %693 = vmatprep.subr.bf16.mxu0 %v491
  %694 = vmatpush2.bf16.msra.mxu0 %v490
  %695 = vmatprep.subr.bf16.mxu0 %v489
  %696 = vmatpush2.bf16.msra.mxu0 %v488
  %697 = vmatprep.subr.bf16.mxu0 %v487
  %698 = vmatpush2.bf16.msra.mxu0 %v486
  %699 = vmatprep.subr.bf16.mxu0 %v485
  %700 = vmatpush2.bf16.msra.mxu0 %v484
  %701 = vmatprep.mubr.bf16.mxu0 %v139
  %702 = vmatmul.mubr.bf16.gmra.mxu0 %v138
  %v703 = vpop.f32.mrf.mxu0
  %v704 = vadd.f32 %v663, %v703
  %v705 = vpop.f32.mrf.mxu0
  %v706 = vadd.f32 %v665, %v705
  %v707 = vpop.f32.mrf.mxu0
  %v708 = vpop.f32.mrf.mxu0
  %709 = vdwg.mxu0
  %710 = vmatprep.subr.bf16.mxu0 %v515
  %711 = vmatpush1.bf16.msra.mxu0 %v514
  %712 = vmatprep.subr.bf16.mxu0 %v513
  %713 = vmatpush1.bf16.msra.mxu0 %v512
  %714 = vmatprep.subr.bf16.mxu0 %v511
  %715 = vmatpush1.bf16.msra.mxu0 %v510
  %716 = vmatprep.subr.bf16.mxu0 %v509
  %717 = vmatpush1.bf16.msra.mxu0 %v508
  %718 = vmatprep.subr.bf16.mxu0 %v507
  %719 = vmatpush1.bf16.msra.mxu0 %v506
  %720 = vmatprep.subr.bf16.mxu0 %v505
  %721 = vmatpush1.bf16.msra.mxu0 %v504
  %722 = vmatprep.subr.bf16.mxu0 %v503
  %723 = vmatpush1.bf16.msra.mxu0 %v502
  %724 = vmatprep.subr.bf16.mxu0 %v501
  %725 = vmatpush1.bf16.msra.mxu0 %v500
  %726 = vmatprep.subr.bf16.mxu0 %v531
  %727 = vmatpush2.bf16.msra.mxu0 %v530
  %728 = vmatprep.subr.bf16.mxu0 %v529
  %729 = vmatpush2.bf16.msra.mxu0 %v528
  %730 = vmatprep.subr.bf16.mxu0 %v527
  %731 = vmatpush2.bf16.msra.mxu0 %v526
  %732 = vmatprep.subr.bf16.mxu0 %v525
  %733 = vmatpush2.bf16.msra.mxu0 %v524
  %734 = vmatprep.subr.bf16.mxu0 %v523
  %735 = vmatpush2.bf16.msra.mxu0 %v522
  %736 = vmatprep.subr.bf16.mxu0 %v521
  %737 = vmatpush2.bf16.msra.mxu0 %v520
  %738 = vmatprep.subr.bf16.mxu0 %v519
  %739 = vmatpush2.bf16.msra.mxu0 %v518
  %740 = vmatprep.subr.bf16.mxu0 %v517
  %741 = vmatpush2.bf16.msra.mxu0 %v516
  %742 = vmatprep.mubr.bf16.mxu0 %v141
  %743 = vmatmul.mubr.bf16.gmra.mxu0 %v140
  %v744 = vpop.f32.mrf.mxu0
  %v745 = vadd.f32 %v704, %v744
  %v746 = vpop.f32.mrf.mxu0
  %v747 = vadd.f32 %v706, %v746
  %v748 = vpop.f32.mrf.mxu0
  %v749 = vpop.f32.mrf.mxu0
  %750 = vdwg.mxu0
  %v751 = vpack.c.bf16 %v745, %v745
  %v752 = vpack.c.bf16 %v747, %v747
  %v755 = vunpack.c.l.b16 %v751
  %v756 = vunpack.c.l.b16 %v752
  %v757 = vpack.c.b16 %v756, %v755
  %759 = vst [vmem:[%s3] sm:$0xff] %v757
  // Predicated region
  $region14: #{_lambda_.1} parent=0 // pred_check
    _
  $region15: #{_lambda_.1} parent=0 // pred_check_branch
    %761 = sbr.rel (0) target = $region17
  $region16: #{_lambda_.1} parent=0 // pred_region
    _
  $region17: #{_lambda_.1} parent=0 // pred_fallthru
    _
  // Predicated region
  $region18: #{_lambda_.1} parent=0 // pred_check
    _
  $region19: #{_lambda_.1} parent=0 // pred_check_branch
    %763 = sbr.rel (0) target = $region21
  $region20: #{_lambda_.1} parent=0 // pred_region
    _
  $region21: #{_lambda_.1} parent=0 // pred_fallthru
    _

</llo_original>
